<compile_context>
chip_gen: v7x
topology: tpu7x:2x2x1
jax: 0.10.0
libtpu: 0.0.40
codegen_flags: <defaults>
</compile_context>

<pallas_src>
import functools

import jax
import jax.numpy as jnp
from jax import lax
from jax.experimental import pallas as pl
from jax.experimental.pallas import tpu as pltpu


def _round_up(a, b):
    return ((a + b - 1) // b) * b


def _cdiv(a, b):
    return (a + b - 1) // b


def _dist_linear_kernel(x_ref, rs_ref, v_ref, gs_ref, o_ref, *, mxu_dtype):
    # x_ref  : (block_m, D)        raw batch tile (native dtype)
    # rs_ref : (block_m, 1)        per-row scale 1/(||x||+1e-5)   (f32)
    # v_ref  : (block_n, D)        raw weight_v tile (native dtype)
    # gs_ref : (1, block_n)        scale * weight_g               (f32)
    # o_ref  : (block_m, block_n)  output tile
    x = x_ref[...]
    v = v_ref[...]

    xm = x if mxu_dtype is None else x.astype(mxu_dtype)
    vm = v if mxu_dtype is None else v.astype(mxu_dtype)

    # Main MXU matmul: x @ v.T (contract last dims), f32 accumulator.
    acc = lax.dot_general(
        xm, vm,
        dimension_numbers=(((1,), (1,)), ((), ())),
        preferred_element_type=jnp.float32)                     # (block_m, block_n)

    # Per-class scale from the weight tile already resident in VMEM:
    #   col_scale[o] = scale * g[o] / ||v[o]||   (WeightNorm semantics: no eps,
    #   an all-zero weight row yields Inf, matching the PyTorch module).
    # A ones-row matmul produces the sum of squares directly in (1, block_n)
    # lane layout, avoiding an XLU transpose; cost is ~1/block_m of the main
    # matmul and hides under it.
    vf = v.astype(jnp.float32)
    ones_row = jnp.ones((1, vf.shape[1]), jnp.float32)
    ssq = lax.dot_general(
        ones_row, vf * vf,
        dimension_numbers=(((1,), (1,)), ((), ())),
        preferred_element_type=jnp.float32)                     # (1, block_n)
    col_scale = gs_ref[...] * lax.rsqrt(ssq)                    # (1, block_n)

    # Two broadcast multiplies on the f32 accumulator, then lane-dense store.
    o_ref[...] = (acc * rs_ref[...] * col_scale).astype(o_ref.dtype)


@functools.partial(jax.jit, static_argnames=("block_m", "block_n", "mxu_dtype"))
def dist_linear(x, weight_v, weight_g, *, block_m=512, block_n=512, mxu_dtype=None):
    """Pallas implementation of distLinear.forward.

    x        : (B, D)  features
    weight_v : (O, D)  WeightNorm direction parameter
    weight_g : (O, 1)  WeightNorm magnitude parameter
    mxu_dtype: optional dtype for the MXU operands only (e.g. jnp.bfloat16 for
               f32 inputs on v6e/v7x); norms, scales and accumulation stay f32.
    returns  : (B, O)  scores, dtype of x
    """
    B, D = x.shape
    O, D2 = weight_v.shape
    assert D == D2 and weight_g.shape == (O, 1)
    scale = 2.0 if O <= 200 else 10.0

    # Hoisted per-row scale (depends only on the batch row; one cheap XLA pass
    # over x instead of one recompute per output-column grid step).
    xf = x.astype(jnp.float32)
    row_scale = 1.0 / (jnp.sqrt(jnp.sum(xf * xf, axis=1, keepdims=True)) + 1e-5)

    # Per-class magnitude; the ||v|| factor is folded into the kernel so the
    # O x D weight is only read from HBM by the kernel itself.
    g_scaled = scale * weight_g.astype(jnp.float32).reshape(1, O)

    # ---- tile selection -----------------------------------------------------
    # Full dim if it fits in one block (always legal: block == array dim keeps
    # the reused operand resident and read exactly once), otherwise an
    # (8,128)-aligned block that tiles it; trailing blocks may be partial.
    block_m = B if B <= block_m else block_m
    block_n = O if O <= block_n else block_n

    in_b = jnp.dtype(x.dtype).itemsize
    out_b = jnp.dtype(x.dtype).itemsize

    def footprint(bm, bn):
        # double-buffered input tiles + double-buffered output tile
        # + lane/sublane-padded side inputs (row_scale, g_scaled).
        return (2 * (bm + bn) * D * in_b
                + 2 * bm * bn * out_b
                + 2 * (bm * 128 + 8 * bn) * 4)

    budget = 40 * 1024 * 1024            # safe under v7x's 64 MiB physical VMEM
    while footprint(block_m, block_n) > budget and (block_m > 64 or block_n > 128):
        if block_m >= block_n and block_m > 64:
            block_m = max(64, _round_up(block_m // 2, 8))
        else:
            block_n = max(128, _round_up(block_n // 2, 128))

    # Megacore occupancy (v7x has 2 TensorCores): a (1,1) grid leaves one idle.
    if _cdiv(B, block_m) * _cdiv(O, block_n) == 1:
        if block_n >= 256:
            block_n = _round_up(block_n // 2, 128)
        elif block_m >= 16:
            block_m = _round_up(block_m // 2, 8)

    grid = (_cdiv(B, block_m), _cdiv(O, block_n))
    vmem_limit = int(min(48 * 1024 * 1024,
                         max(footprint(block_m, block_n) + 6 * 1024 * 1024,
                             16 * 1024 * 1024)))

    kernel = functools.partial(_dist_linear_kernel, mxu_dtype=mxu_dtype)

    # TODO(synk): for very large D on v7x, add a K grid axis over D
    # ("arbitrary") with an f32 VMEM accumulator instead of shrinking blocks.
    out = pl.pallas_call(
        kernel,
        out_shape=jax.ShapeDtypeStruct((B, O), x.dtype),
        grid_spec=pltpu.PrefetchScalarGridSpec(
            num_scalar_prefetch=0,
            grid=grid,
            in_specs=[
                pl.BlockSpec((block_m, D), lambda i, j: (i, 0)),   # x tile (i only)
                pl.BlockSpec((block_m, 1), lambda i, j: (i, 0)),   # row_scale
                pl.BlockSpec((block_n, D), lambda i, j: (j, 0)),   # weight_v tile
                pl.BlockSpec((1, block_n), lambda i, j: (0, j)),   # scale * g
            ],
            out_specs=pl.BlockSpec((block_m, block_n), lambda i, j: (i, j)),
        ),
        compiler_params=pltpu.CompilerParams(
            dimension_semantics=("parallel", "parallel"),
            vmem_limit_bytes=vmem_limit),
    )(x, row_scale, weight_v, g_scaled)

    return out


def dist_linear_ref(x, weight_v, weight_g):
    """Pure-JAX reference (exact divides, highest-precision matmul)."""
    O = weight_v.shape[0]
    scale = 2.0 if O <= 200 else 10.0
    x = x.astype(jnp.float32)
    weight_v = weight_v.astype(jnp.float32)
    x_n = x / (jnp.linalg.norm(x, axis=1, keepdims=True) + 1e-5)
    w = (weight_g.astype(jnp.float32) * weight_v
         / jnp.linalg.norm(weight_v, axis=1, keepdims=True))
    return scale * jnp.dot(x_n, w.T, precision=lax.Precision.HIGHEST)


if __name__ == "__main__":
    key = jax.random.PRNGKey(0)

    def make_case(k, batch, indim, outdim, dtype):
        kx, kw = jax.random.split(k)
        xx = jax.random.normal(kx, (batch, indim), dtype=jnp.float32)
        # nn.Linear default init U(-1/sqrt(indim), 1/sqrt(indim)), then
        # WeightNorm init: weight_g = per-row L2 norm of the original weight.
        bound = 1.0 / (indim ** 0.5)
        wv = jax.random.uniform(
            kw, (outdim, indim), dtype=jnp.float32, minval=-bound, maxval=bound)
        wg = jnp.linalg.norm(wv, axis=1, keepdims=True)
        return xx.astype(dtype), wv.astype(dtype), wg

    k1, k2, k3 = jax.random.split(key, 3)

    # Case 1: small module-consistent shapes (batch=8, indim=32, outdim=16),
    # scale_factor=2 branch, single (partial) block, exact f32 path.
    x, wv, wg = make_case(k1, 8, 32, 16, jnp.float32)
    out = jax.block_until_ready(dist_linear(x, wv, wg))
    ref = dist_linear_ref(x, wv, wg)
    assert out.shape == (8, 16)
    assert jnp.allclose(out, ref, atol=2e-3, rtol=2e-3), "case1 mismatch vs reference"

    # Case 2: multi-tile 2-D grid with partial edge blocks on both axes (no
    # padding copies) and the scale_factor=10 branch (outdim > 200).
    x2, wv2, wg2 = make_case(k2, 260, 160, 300, jnp.float32)
    out2 = jax.block_until_ready(dist_linear(x2, wv2, wg2, block_m=128, block_n=128))
    ref2 = dist_linear_ref(x2, wv2, wg2)
    assert out2.shape == (260, 300)
    assert jnp.allclose(out2, ref2, atol=2e-2, rtol=2e-3), "case2 mismatch vs reference"

    # Case 3: f32 inputs with bf16 MXU operands (recommended on v6e/v7x);
    # accumulation and all norm/scale math stay f32.
    x3, wv3, wg3 = make_case(k3, 64, 256, 300, jnp.float32)
    out3 = jax.block_until_ready(dist_linear(x3, wv3, wg3, mxu_dtype=jnp.bfloat16))
    ref3 = dist_linear_ref(x3, wv3, wg3)
    assert out3.shape == (64, 300)
    assert jnp.allclose(out3, ref3, atol=8e-2, rtol=8e-2), "case3 mismatch vs reference"

    print("KERNEL_OK")
</pallas_src>

<mosaic_0001>
module attributes {stable_mosaic.version = 11 : i64} {
  func.func @_dist_linear_kernel(%arg0: i32, %arg1: i32, %arg2: memref<8x32xf32, #tpu.memory_space<vmem>>, %arg3: memref<8x1xf32, #tpu.memory_space<vmem>>, %arg4: memref<16x32xf32, #tpu.memory_space<vmem>>, %arg5: memref<1x16xf32, #tpu.memory_space<vmem>>, %arg6: memref<8x16xf32, #tpu.memory_space<vmem>>) attributes {dimension_semantics = [#tpu.dimension_semantics<parallel>, #tpu.dimension_semantics<parallel>], iteration_bounds = array<i64: 1, 1>, scalar_prefetch = 0 : i64, scratch_operands = 0 : i64, tpu.core_type = #tpu.core_type<tc>, window_params = [{transform_indices = @transform_0, window_bounds = array<i64: 8, 32>}, {transform_indices = @transform_1, window_bounds = array<i64: 8, 1>}, {transform_indices = @transform_2, window_bounds = array<i64: 16, 32>}, {transform_indices = @transform_3, window_bounds = array<i64: 1, 16>}, {transform_indices = @transform_4, window_bounds = array<i64: 8, 16>}]} {
    %c0 = arith.constant 0 : index
    %c0_0 = arith.constant 0 : index
    %0 = vector.load %arg2[%c0, %c0_0] : memref<8x32xf32, #tpu.memory_space<vmem>>, vector<8x32xf32>
    %c0_1 = arith.constant 0 : index
    %c0_2 = arith.constant 0 : index
    %1 = vector.load %arg4[%c0_1, %c0_2] : memref<16x32xf32, #tpu.memory_space<vmem>>, vector<16x32xf32>
    %cst = arith.constant dense<0.000000e+00> : vector<8x16xf32>
    %2 = tpu.matmul %0, %1, %cst {dimension_numbers = #tpu.dot_dimension_numbers<[1], [1], [0], [0], [0, 0, 1, 0], [], []>} : vector<8x32xf32>, vector<16x32xf32>, vector<8x16xf32> -> vector<8x16xf32>
    %cst_3 = arith.constant 1.000000e+00 : f32
    %3 = vector.broadcast %cst_3 : f32 to vector<1x32xf32>
    %4 = arith.mulf %1, %1 : vector<16x32xf32>
    %cst_4 = arith.constant dense<0.000000e+00> : vector<1x16xf32>
    %5 = tpu.matmul %3, %4, %cst_4 {dimension_numbers = #tpu.dot_dimension_numbers<[1], [1], [0], [0], [0, 0, 1, 0], [], []>} : vector<1x32xf32>, vector<16x32xf32>, vector<1x16xf32> -> vector<1x16xf32>
    %c0_5 = arith.constant 0 : index
    %c0_6 = arith.constant 0 : index
    %6 = vector.load %arg5[%c0_5, %c0_6] : memref<1x16xf32, #tpu.memory_space<vmem>>, vector<1x16xf32>
    %7 = math.rsqrt %5 : vector<1x16xf32>
    %8 = arith.mulf %6, %7 : vector<1x16xf32>
    %c0_7 = arith.constant 0 : index
    %c0_8 = arith.constant 0 : index
    %9 = vector.load %arg3[%c0_7, %c0_8] : memref<8x1xf32, #tpu.memory_space<vmem>>, vector<8x1xf32>
    %10 = vector.broadcast %9 : vector<8x1xf32> to vector<8x16xf32>
    %11 = arith.mulf %2, %10 : vector<8x16xf32>
    %12 = vector.broadcast %8 : vector<1x16xf32> to vector<8x16xf32>
    %13 = arith.mulf %11, %12 : vector<8x16xf32>
    %c0_9 = arith.constant 0 : index
    %c0_10 = arith.constant 0 : index
    %14 = vector.load %arg6[%c0_9, %c0_10] : memref<8x16xf32, #tpu.memory_space<vmem>>, vector<8x16xf32>
    tpu.vector_store %arg6[%c0_9, %c0_10], %13 {strides = array<i32>} : memref<8x16xf32, #tpu.memory_space<vmem>>, vector<8x16xf32>,
    return
  }
  func.func @transform_0(%arg0: i32, %arg1: i32) -> (i32, i32) {
    %c0_i32 = arith.constant 0 : i32
    %c0_i32_0 = arith.constant 0 : i32
    return %arg0, %c0_i32 : i32, i32
  }
  func.func @transform_1(%arg0: i32, %arg1: i32) -> (i32, i32) {
    %c0_i32 = arith.constant 0 : i32
    %c0_i32_0 = arith.constant 0 : i32
    return %arg0, %c0_i32 : i32, i32
  }
  func.func @transform_2(%arg0: i32, %arg1: i32) -> (i32, i32) {
    %c0_i32 = arith.constant 0 : i32
    %c0_i32_0 = arith.constant 0 : i32
    return %arg1, %c0_i32 : i32, i32
  }
  func.func @transform_3(%arg0: i32, %arg1: i32) -> (i32, i32) {
    %c0_i32 = arith.constant 0 : i32
    %c0_i32_0 = arith.constant 0 : i32
    return %c0_i32, %arg1 : i32, i32
  }
  func.func @transform_4(%arg0: i32, %arg1: i32) -> (i32, i32) {
    %c0_i32 = arith.constant 0 : i32
    return %arg0, %arg1 : i32, i32
  }
}

</mosaic_0001>

<llo_original>
// kernel: dist_linear.1
$region0: #{dist_linear.1}
  #allocation0 [shape = 'u32[]', space=smem, size = 0x4, offset = 0x4, fixed_abs, tag = 'smem constant byte address 0x4 - core index']
  #allocation1 [shape = 'u32[144,128]{1,0:T(1,128)}', space=vmem, size = 0x12000, scoped, tag = 'internal scratch']
  %s0 = inlined_call_operand.vmem [shape: f32[8,32], index: 0, kind: input, shape index: {}]
  %s1 = inlined_call_operand.vmem [shape: f32[8,1], index: 1, kind: input, shape index: {}]
  %s2 = inlined_call_operand.vmem [shape: f32[16,32], index: 2, kind: input, shape index: {}]
  %s3 = inlined_call_operand.vmem [shape: f32[1,16], index: 3, kind: input, shape index: {}]
  %s4 = inlined_call_operand.hbm [shape: f32[8,16], index: 4, kind: output, shape index: {}]
  %s5 = sld [smem:[#allocation0]]
  $region26: #{dist_linear.1} parent=0
    _
  %s7 = ssub.s32 1, %s5
  %s8 = scalar_select 0, %s7, %s5
  $region1: #{dist_linear.1} parent=0
    #allocation2 [shape = 'u8[4096]{0}', space=vmem, size = 0x1000, scoped, tag = 'output window, operand 0, single buffered']
    #allocation3 [shape = 's32[1]{0}', space=sflag, size = 0x4, scoped, tag = 'scoped memory for dist_linear.1']
    %9 = vsyncpa [#allocation3], 0
    // Predicated region
    $region2: #{dist_linear.1} parent=1 // pred_check
      _
    $region3: #{dist_linear.1} parent=1 // pred_check_branch
      %11 = sbr.rel (0) target = $region5
    $region4: #{dist_linear.1} parent=1 // pred_region
      _
    $region5: #{dist_linear.1} parent=1 // pred_fallthru
      _
    // Predicated region
    $region6: #{dist_linear.1} parent=1 // pred_check
      _
    $region7: #{dist_linear.1} parent=1 // pred_check_branch
      %13 = sbr.rel (0) target = $region9
    $region8: #{dist_linear.1} parent=1 // pred_region
      _
    $region9: #{dist_linear.1} parent=1 // pred_fallthru
      _
    // Predicated region
    $region10: #{dist_linear.1} parent=1 // pred_check
      _
    $region11: #{dist_linear.1} parent=1 // pred_check_branch
      %15 = sbr.rel (0) target = $region13
    $region12: #{dist_linear.1} parent=1 // pred_region
      _
    $region13: #{dist_linear.1} parent=1 // pred_fallthru
      _
    // Predicated region
    $region14: #{dist_linear.1} parent=1 // pred_check
      _
    $region15: #{dist_linear.1} parent=1 // pred_check_branch
      %17 = sbr.rel (0) target = $region17
    $region16: #{dist_linear.1} parent=1 // pred_region
      _
    $region17: #{dist_linear.1} parent=1 // pred_fallthru
      _
    %v18 = vld [vmem:[%s0] sm:$0xff]
    %v19 = vld [vmem:[%s2] sm:$0xff]
    %v20 = vld [vmem:[%s2 + $0x8] sm:$0xff]
    %vm21 = vcmask 261120
    %v23 = vsel %vm21, %v18, 0
    %v26 = vsel %vm21, %v19, 0
    %v29 = vsel %vm21, %v20, 0
    %31 = vmatprep.subr.mxu0 0.0
    %32 = vmatpush1.xpose.msra.mxu0 %v26
    %33 = vmatprep.subr.mxu0 0.0
    %34 = vmatpush1.xpose.msra.mxu0 %v29
    %35 = vmatprep.subr.mxu0 0.0
    %36 = vmatpush1.xpose.msra.mxu0 0.0
    %37 = vmatprep.subr.mxu0 0.0
    %38 = vmatpush1.xpose.msra.mxu0 0.0
    %39 = vmatprep.subr.mxu0 0.0
    %40 = vmatpush1.xpose.msra.mxu0 0.0
    %41 = vmatprep.subr.mxu0 0.0
    %42 = vmatpush1.xpose.msra.mxu0 0.0
    %43 = vmatprep.subr.mxu0 0.0
    %44 = vmatpush1.xpose.msra.mxu0 0.0
    %45 = vmatprep.subr.mxu0 0.0
    %46 = vmatpush1.xpose.msra.mxu0 0.0
    %47 = vmatprep.subr.mxu0 0.0
    %48 = vmatpush1.xpose.msra.mxu0 0.0
    %49 = vmatprep.subr.mxu0 0.0
    %50 = vmatpush1.xpose.msra.mxu0 0.0
    %51 = vmatprep.subr.mxu0 0.0
    %52 = vmatpush1.xpose.msra.mxu0 0.0
    %53 = vmatprep.subr.mxu0 0.0
    %54 = vmatpush1.xpose.msra.mxu0 0.0
    %55 = vmatprep.subr.mxu0 0.0
    %56 = vmatpush1.xpose.msra.mxu0 0.0
    %57 = vmatprep.subr.mxu0 0.0
    %58 = vmatpush1.xpose.msra.mxu0 0.0
    %59 = vmatprep.subr.mxu0 0.0
    %60 = vmatpush1.xpose.msra.mxu0 0.0
    %61 = vmatprep.subr.mxu0 0.0
    %62 = vmatpush1.xpose.msra.mxu0 0.0
    %63 = vmatprep.subr.mxu0 0.0
    %64 = vmatpush1.xpose.msra.mxu0 0.0
    %65 = vmatprep.subr.mxu0 0.0
    %66 = vmatpush1.xpose.msra.mxu0 0.0
    %67 = vmatprep.subr.mxu0 0.0
    %68 = vmatpush1.xpose.msra.mxu0 0.0
    %69 = vmatprep.subr.mxu0 0.0
    %70 = vmatpush1.xpose.msra.mxu0 0.0
    %71 = vmatprep.subr.mxu0 0.0
    %72 = vmatpush1.xpose.msra.mxu0 0.0
    %73 = vmatprep.subr.mxu0 0.0
    %74 = vmatpush1.xpose.msra.mxu0 0.0
    %75 = vmatprep.subr.mxu0 0.0
    %76 = vmatpush1.xpose.msra.mxu0 0.0
    %77 = vmatprep.subr.mxu0 0.0
    %78 = vmatpush1.xpose.msra.mxu0 0.0
    %79 = vmatprep.subr.mxu0 0.0
    %80 = vmatpush1.xpose.msra.mxu0 0.0
    %81 = vmatprep.subr.mxu0 0.0
    %82 = vmatpush1.xpose.msra.mxu0 0.0
    %83 = vmatprep.subr.mxu0 0.0
    %84 = vmatpush1.xpose.msra.mxu0 0.0
    %85 = vmatprep.subr.mxu0 0.0
    %86 = vmatpush1.xpose.msra.mxu0 0.0
    %87 = vmatprep.subr.mxu0 0.0
    %88 = vmatpush1.xpose.msra.mxu0 0.0
    %89 = vmatprep.subr.mxu0 0.0
    %90 = vmatpush1.xpose.msra.mxu0 0.0
    %91 = vmatprep.subr.mxu0 0.0
    %92 = vmatpush1.xpose.msra.mxu0 0.0
    %93 = vmatprep.subr.mxu0 0.0
    %94 = vmatpush1.xpose.msra.mxu0 0.0
    %95 = vmatprep.mubr.f32.mxu0 0.0
    %96 = vmatmul.mubr.f32.gmra.mrb[0].mxu0 %v23
    %v97 = vpop.f32.mrb[0].mxu0
    %v98 = vadd.f32 0.0, %v97
    %v99 = vpop.f32.mrb[0].mxu0
    %100 = vdwg.mxu0
    %v101 = vmul.f32 %v19, %v19
    %v102 = vmul.f32 %v20, %v20
    %v104 = vsel %vm21, 1.0, 0
    %v107 = vsel %vm21, %v101, 0
    %v110 = vsel %vm21, %v102, 0
    %112 = vmatprep.subr.mxu0 0.0
    %113 = vmatpush1.xpose.msra.mxu0 %v107
    %114 = vmatprep.subr.mxu0 0.0
    %115 = vmatpush1.xpose.msra.mxu0 %v110
    %116 = vmatprep.subr.mxu0 0.0
    %117 = vmatpush1.xpose.msra.mxu0 0.0
    %118 = vmatprep.subr.mxu0 0.0
    %119 = vmatpush1.xpose.msra.mxu0 0.0
    %120 = vmatprep.subr.mxu0 0.0
    %121 = vmatpush1.xpose.msra.mxu0 0.0
    %122 = vmatprep.subr.mxu0 0.0
    %123 = vmatpush1.xpose.msra.mxu0 0.0
    %124 = vmatprep.subr.mxu0 0.0
    %125 = vmatpush1.xpose.msra.mxu0 0.0
    %126 = vmatprep.subr.mxu0 0.0
    %127 = vmatpush1.xpose.msra.mxu0 0.0
    %128 = vmatprep.subr.mxu0 0.0
    %129 = vmatpush1.xpose.msra.mxu0 0.0
    %130 = vmatprep.subr.mxu0 0.0
    %131 = vmatpush1.xpose.msra.mxu0 0.0
    %132 = vmatprep.subr.mxu0 0.0
    %133 = vmatpush1.xpose.msra.mxu0 0.0
    %134 = vmatprep.subr.mxu0 0.0
    %135 = vmatpush1.xpose.msra.mxu0 0.0
    %136 = vmatprep.subr.mxu0 0.0
    %137 = vmatpush1.xpose.msra.mxu0 0.0
    %138 = vmatprep.subr.mxu0 0.0
    %139 = vmatpush1.xpose.msra.mxu0 0.0
    %140 = vmatprep.subr.mxu0 0.0
    %141 = vmatpush1.xpose.msra.mxu0 0.0
    %142 = vmatprep.subr.mxu0 0.0
    %143 = vmatpush1.xpose.msra.mxu0 0.0
    %144 = vmatprep.subr.mxu0 0.0
    %145 = vmatpush1.xpose.msra.mxu0 0.0
    %146 = vmatprep.subr.mxu0 0.0
    %147 = vmatpush1.xpose.msra.mxu0 0.0
    %148 = vmatprep.subr.mxu0 0.0
    %149 = vmatpush1.xpose.msra.mxu0 0.0
    %150 = vmatprep.subr.mxu0 0.0
    %151 = vmatpush1.xpose.msra.mxu0 0.0
    %152 = vmatprep.subr.mxu0 0.0
    %153 = vmatpush1.xpose.msra.mxu0 0.0
    %154 = vmatprep.subr.mxu0 0.0
    %155 = vmatpush1.xpose.msra.mxu0 0.0
    %156 = vmatprep.subr.mxu0 0.0
    %157 = vmatpush1.xpose.msra.mxu0 0.0
    %158 = vmatprep.subr.mxu0 0.0
    %159 = vmatpush1.xpose.msra.mxu0 0.0
    %160 = vmatprep.subr.mxu0 0.0
    %161 = vmatpush1.xpose.msra.mxu0 0.0
    %162 = vmatprep.subr.mxu0 0.0
    %163 = vmatpush1.xpose.msra.mxu0 0.0
    %164 = vmatprep.subr.mxu0 0.0
    %165 = vmatpush1.xpose.msra.mxu0 0.0
    %166 = vmatprep.subr.mxu0 0.0
    %167 = vmatpush1.xpose.msra.mxu0 0.0
    %168 = vmatprep.subr.mxu0 0.0
    %169 = vmatpush1.xpose.msra.mxu0 0.0
    %170 = vmatprep.subr.mxu0 0.0
    %171 = vmatpush1.xpose.msra.mxu0 0.0
    %172 = vmatprep.subr.mxu0 0.0
    %173 = vmatpush1.xpose.msra.mxu0 0.0
    %174 = vmatprep.subr.mxu0 0.0
    %175 = vmatpush1.xpose.msra.mxu0 0.0
    %176 = vmatprep.mubr.f32.mxu0 0.0
    %177 = vmatmul.mubr.f32.gmra.mrb[0].mxu0 %v104
    %v178 = vpop.f32.mrb[0].mxu0
    %v179 = vadd.f32 0.0, %v178
    %v180 = vpop.f32.mrb[0].mxu0
    %181 = vdwg.mxu0
    %v182 = vld [vmem:[%s3] sm:$0x1]
    %v183 = vrsqrt.pop %v179
    %v184 = vmul.f32 %v182, %v183
    %v185 = vld [vmem:[%s1] sm:$0xff]
    %187 = vset.pattern.permute.xlu0 0
    %188 = vperm.xlu0 %187, %v185
    %v189 = vpop.permute.xlu0 %188
    %v191 = vmul.f32 %v98, %v189
    %v193 = vlaneseq
    %v194 = vshrl.u32 %v193, 7
    %v195 = vsub.s32 0, %v194
    %v196 = vrot.slane %v184, %v195
    %v198 = vmul.f32 %v191, %v196
    %vm199 = vcmask 130048
    %200 = vst.msk [vmem:[#allocation2] sm:$0xff] %vm199, %v198
    // Predicated region
    $region18: #{dist_linear.1} parent=1 // pred_check
      _
    $region19: #{dist_linear.1} parent=1 // pred_check_branch
      %202 = sbr.rel (0) target = $region21
    $region20: #{dist_linear.1} parent=1 // pred_region
      %s204 = ssub.s32 128, 128
      %205 = vsyncadd [#allocation3], %s204
      %s207 = sshll.u32 [#allocation2], 4
      %s208 = int_to_ptr.vmem [resolvable:$true] %s207
      %210 = dma.vmem_to_hbm [thread:$0]  %s208, 128, %s4, [#allocation3]
    $region21: #{dist_linear.1} parent=1 // pred_fallthru
      _
    // Predicated region
    $region22: #{dist_linear.1} parent=1 // pred_check
      _
    $region23: #{dist_linear.1} parent=1 // pred_check_branch
      %212 = sbr.rel (0) target = $region25
    $region24: #{dist_linear.1} parent=1 // pred_region
      %213 = dma.done [#allocation3], 128
    $region25: #{dist_linear.1} parent=1 // pred_fallthru
      _
    %214 = vsyncpa [#allocation3], 1

</llo_original>
